<compile_context>
chip_gen: v5e
topology: v5e:2x2
jax: 0.10.0
libtpu: 0.0.40
codegen_flags: <defaults>
</compile_context>

<pallas_src>
import jax
import jax.numpy as jnp
from jax.experimental import pallas as pl
from jax.experimental.pallas import tpu as pltpu

Z_DIM = 64
HIDDEN = 256
IMG_DIM = 28 * 28        # 784 — logical output width (PyTorch img_dim)


def _round_up(x, m):
    return (x + m - 1) // m * m


def generator_kernel(x_ref, w1_ref, b1_ref, w2_ref, b2_ref, o_ref):
    # x: (tb, Z) f32 | w1: (Z, H) bf16 | b1: (1, H) f32
    # w2: (H, D) bf16 | b2: (1, D) f32 | o: (tb, D) bf16
    x = x_ref[...].astype(jnp.bfloat16)

    # Linear 1 (MXU, bf16 inputs / f32 accumulation) + bias + LeakyReLU(0.1)
    h = jnp.dot(x, w1_ref[...], preferred_element_type=jnp.float32)
    h = h + b1_ref[...]                  # f32 bias add (VPU)
    h = jnp.maximum(h, 0.1 * h)          # LeakyReLU: mul+max (2 VPU ops)

    # Linear 2 (MXU) + bias + Tanh (EUP); output stored as bf16
    out = jnp.dot(h.astype(jnp.bfloat16), w2_ref[...],
                  preferred_element_type=jnp.float32)
    out = out + b2_ref[...]
    o_ref[...] = jnp.tanh(out).astype(o_ref.dtype)


def prepare_params(w1, b1, w2, b2):
    """One-time weight prep (hoisted out of the per-call hot path).

    Weights stored as (in_features, out_features) so the kernel computes
    x @ W + b (== PyTorch's x @ W.T + b).  Matmul inputs in bf16 (f32 MXU
    accumulation in-kernel), biases kept f32.
    """
    w1b = w1.astype(jnp.bfloat16)
    w2b = w2.astype(jnp.bfloat16)
    b1f = b1.reshape(1, HIDDEN).astype(jnp.float32)
    b2f = b2.reshape(1, IMG_DIM).astype(jnp.float32)
    return w1b, b1f, w2b, b2f


def generator_forward(x, params, *, batch_tile=1024):
    """GAN generator forward.  x: (B, Z_DIM) f32.  Returns (B, IMG_DIM) bf16."""
    w1b, b1f, w2b, b2f = params
    B = x.shape[0]

    # Batch tile: multiple of 8 (sublane), capped at `batch_tile`.
    tb = min(batch_tile, _round_up(B, 8))
    # Keep >= 2 grid steps when the batch allows it so both TensorCores on
    # v7x get work (no-op on single-TC v5e/v6e; 1 step only for tiny batches).
    if B >= 16 and tb >= _round_up(B, 8):
        tb = _round_up(B, 16) // 2
    Bp = _round_up(B, tb)
    if Bp != B:
        x = jnp.pad(x, ((0, Bp - B), (0, 0)))

    grid = (Bp // tb,)

    cost = pl.CostEstimate(
        flops=2 * Bp * (Z_DIM * HIDDEN + HIDDEN * IMG_DIM),
        transcendentals=Bp * IMG_DIM,
        bytes_accessed=(Bp * Z_DIM * 4                             # x (f32)
                        + (Z_DIM * HIDDEN + HIDDEN * IMG_DIM) * 2  # bf16 weights
                        + (HIDDEN + IMG_DIM) * 4                   # f32 biases
                        + Bp * IMG_DIM * 2),                       # bf16 output
    )

    out = pl.pallas_call(
        generator_kernel,
        out_shape=jax.ShapeDtypeStruct((Bp, IMG_DIM), jnp.bfloat16),
        grid_spec=pltpu.PrefetchScalarGridSpec(
            num_scalar_prefetch=0,
            grid=grid,
            in_specs=[
                pl.BlockSpec((tb, Z_DIM), lambda i: (i, 0)),         # x streams
                pl.BlockSpec((Z_DIM, HIDDEN), lambda i: (0, 0)),     # w1 resident
                pl.BlockSpec((1, HIDDEN), lambda i: (0, 0)),         # b1 resident
                pl.BlockSpec((HIDDEN, IMG_DIM), lambda i: (0, 0)),   # w2 resident
                pl.BlockSpec((1, IMG_DIM), lambda i: (0, 0)),        # b2 resident
            ],
            out_specs=pl.BlockSpec((tb, IMG_DIM), lambda i: (i, 0)),
        ),
        compiler_params=pltpu.CompilerParams(
            # Batch grid is independent across steps; shard across TCs on v7x.
            dimension_semantics=("parallel",),
        ),
        cost_estimate=cost,
    )(x, w1b, b1f, w2b, b2f)

    # Only the padded batch rows (if any) get sliced off; no column slice.
    return out if Bp == B else out[:B]


def init_params(key):
    """Deterministic init matching PyTorch nn.Linear default (+/- 1/sqrt(fan_in))."""
    k1, k2, k3, k4 = jax.random.split(key, 4)
    lim1 = 1.0 / jnp.sqrt(jnp.float32(Z_DIM))
    lim2 = 1.0 / jnp.sqrt(jnp.float32(HIDDEN))
    w1 = jax.random.uniform(k1, (Z_DIM, HIDDEN), jnp.float32, -lim1, lim1)
    b1 = jax.random.uniform(k2, (HIDDEN,), jnp.float32, -lim1, lim1)
    w2 = jax.random.uniform(k3, (HIDDEN, IMG_DIM), jnp.float32, -lim2, lim2)
    b2 = jax.random.uniform(k4, (IMG_DIM,), jnp.float32, -lim2, lim2)
    return w1, b1, w2, b2


def reference_forward(x, w1, b1, w2, b2):
    h = x @ w1 + b1
    h = jnp.where(h > 0, h, 0.1 * h)
    return jnp.tanh(h @ w2 + b2)


if __name__ == "__main__":
    key = jax.random.PRNGKey(0)
    k_params, k_x = jax.random.split(key)

    w1, b1, w2, b2 = init_params(k_params)
    prepared = prepare_params(w1, b1, w2, b2)

    batch = 8
    x = jax.random.normal(k_x, (batch, Z_DIM), jnp.float32)  # latent noise z

    out = generator_forward(x, prepared)
    out = jax.block_until_ready(out)

    ref = reference_forward(x, w1, b1, w2, b2)
    assert out.shape == (batch, IMG_DIM)
    # bf16 matmul inputs + bf16 output vs f32 reference: tanh keeps values in
    # [-1, 1], so bf16 rounding (~0.4%) stays well inside this tolerance.
    assert jnp.allclose(out.astype(jnp.float32), ref, atol=2e-2, rtol=2e-2)

    print("KERNEL_OK")
</pallas_src>

<mosaic_0001>
module attributes {stable_mosaic.version = 11 : i64} {
  func.func @generator_kernel(%arg0: i32, %arg1: memref<8x64xf32, #tpu.memory_space<vmem>>, %arg2: memref<64x256xbf16, #tpu.memory_space<vmem>>, %arg3: memref<1x256xf32, #tpu.memory_space<vmem>>, %arg4: memref<256x784xbf16, #tpu.memory_space<vmem>>, %arg5: memref<1x784xf32, #tpu.memory_space<vmem>>, %arg6: memref<8x784xbf16, #tpu.memory_space<vmem>>) attributes {dimension_semantics = [#tpu.dimension_semantics<parallel>], iteration_bounds = array<i64: 1>, scalar_prefetch = 0 : i64, scratch_operands = 0 : i64, tpu.core_type = #tpu.core_type<tc>, window_params = [{transform_indices = @transform_0, window_bounds = array<i64: 8, 64>}, {pipeline_mode = #tpu.pipeline_mode<synchronous>, transform_indices = @transform_1, window_bounds = array<i64: 64, 256>}, {pipeline_mode = #tpu.pipeline_mode<synchronous>, transform_indices = @transform_2, window_bounds = array<i64: 1, 256>}, {pipeline_mode = #tpu.pipeline_mode<synchronous>, transform_indices = @transform_3, window_bounds = array<i64: 256, 784>}, {pipeline_mode = #tpu.pipeline_mode<synchronous>, transform_indices = @transform_4, window_bounds = array<i64: 1, 784>}, {transform_indices = @transform_5, window_bounds = array<i64: 8, 784>}]} {
    %c0 = arith.constant 0 : index
    %c0_0 = arith.constant 0 : index
    %0 = vector.load %arg1[%c0, %c0_0] : memref<8x64xf32, #tpu.memory_space<vmem>>, vector<8x64xf32>
    %1 = arith.truncf %0 : vector<8x64xf32> to vector<8x64xbf16>
    %c0_1 = arith.constant 0 : index
    %c0_2 = arith.constant 0 : index
    %2 = vector.load %arg2[%c0_1, %c0_2] : memref<64x256xbf16, #tpu.memory_space<vmem>>, vector<64x256xbf16>
    %cst = arith.constant dense<0.000000e+00> : vector<8x256xf32>
    %3 = tpu.matmul %1, %2, %cst {dimension_numbers = #tpu.dot_dimension_numbers<[1], [0], [0], [1], [0, 0, 1, 1], [], []>} : vector<8x64xbf16>, vector<64x256xbf16>, vector<8x256xf32> -> vector<8x256xf32>
    %c0_3 = arith.constant 0 : index
    %c0_4 = arith.constant 0 : index
    %4 = vector.load %arg3[%c0_3, %c0_4] : memref<1x256xf32, #tpu.memory_space<vmem>>, vector<1x256xf32>
    %5 = vector.broadcast %4 : vector<1x256xf32> to vector<8x256xf32>
    %6 = arith.addf %3, %5 : vector<8x256xf32>
    %cst_5 = arith.constant 1.000000e-01 : f32
    %7 = vector.broadcast %cst_5 : f32 to vector<8x256xf32>
    %8 = arith.mulf %7, %6 : vector<8x256xf32>
    %9 = arith.maximumf %6, %8 : vector<8x256xf32>
    %10 = arith.truncf %9 : vector<8x256xf32> to vector<8x256xbf16>
    %c0_6 = arith.constant 0 : index
    %c0_7 = arith.constant 0 : index
    %11 = vector.load %arg4[%c0_6, %c0_7] : memref<256x784xbf16, #tpu.memory_space<vmem>>, vector<256x784xbf16>
    %cst_8 = arith.constant dense<0.000000e+00> : vector<8x784xf32>
    %12 = tpu.matmul %10, %11, %cst_8 {dimension_numbers = #tpu.dot_dimension_numbers<[1], [0], [0], [1], [0, 0, 1, 1], [], []>} : vector<8x256xbf16>, vector<256x784xbf16>, vector<8x784xf32> -> vector<8x784xf32>
    %c0_9 = arith.constant 0 : index
    %c0_10 = arith.constant 0 : index
    %13 = vector.load %arg5[%c0_9, %c0_10] : memref<1x784xf32, #tpu.memory_space<vmem>>, vector<1x784xf32>
    %14 = vector.broadcast %13 : vector<1x784xf32> to vector<8x784xf32>
    %15 = arith.addf %12, %14 : vector<8x784xf32>
    %16 = math.tanh %15 : vector<8x784xf32>
    %17 = arith.truncf %16 : vector<8x784xf32> to vector<8x784xbf16>
    %c0_11 = arith.constant 0 : index
    %c0_12 = arith.constant 0 : index
    %18 = vector.load %arg6[%c0_11, %c0_12] : memref<8x784xbf16, #tpu.memory_space<vmem>>, vector<8x784xbf16>
    tpu.vector_store %arg6[%c0_11, %c0_12], %17 {strides = array<i32>} : memref<8x784xbf16, #tpu.memory_space<vmem>>, vector<8x784xbf16>,
    return
  }
  func.func @transform_0(%arg0: i32) -> (i32, i32) {
    %c0_i32 = arith.constant 0 : i32
    %c0_i32_0 = arith.constant 0 : i32
    return %arg0, %c0_i32 : i32, i32
  }
  func.func @transform_1(%arg0: i32) -> (i32, i32) {
    %c0_i32 = arith.constant 0 : i32
    %c0_i32_0 = arith.constant 0 : i32
    %c0_i32_1 = arith.constant 0 : i32
    return %c0_i32, %c0_i32_0 : i32, i32
  }
  func.func @transform_2(%arg0: i32) -> (i32, i32) {
    %c0_i32 = arith.constant 0 : i32
    %c0_i32_0 = arith.constant 0 : i32
    %c0_i32_1 = arith.constant 0 : i32
    return %c0_i32, %c0_i32_0 : i32, i32
  }
  func.func @transform_3(%arg0: i32) -> (i32, i32) {
    %c0_i32 = arith.constant 0 : i32
    %c0_i32_0 = arith.constant 0 : i32
    %c0_i32_1 = arith.constant 0 : i32
    return %c0_i32, %c0_i32_0 : i32, i32
  }
  func.func @transform_4(%arg0: i32) -> (i32, i32) {
    %c0_i32 = arith.constant 0 : i32
    %c0_i32_0 = arith.constant 0 : i32
    %c0_i32_1 = arith.constant 0 : i32
    return %c0_i32, %c0_i32_0 : i32, i32
  }
  func.func @transform_5(%arg0: i32) -> (i32, i32) {
    %c0_i32 = arith.constant 0 : i32
    %c0_i32_0 = arith.constant 0 : i32
    return %arg0, %c0_i32 : i32, i32
  }
}

</mosaic_0001>

<llo_original>
// kernel: tpu_custom_call.1
$region0: #{tpu_custom_call.1}
  #allocation0 [shape = 'u32[]', space=smem, size = 0x4, offset = 0x4, fixed_abs, tag = 'smem constant byte address 0x4 - core index']
  #allocation1 [shape = 'u32[72,128]{1,0:T(1,128)}', space=vmem, size = 0x9000, scoped, tag = 'internal scratch']
  %s0 = inlined_call_operand.vmem [shape: f32[8,64], index: 0, kind: input, shape index: {}]
  %s1 = inlined_call_operand.vmem [shape: bf16[64,256], index: 1, kind: input, shape index: {}]
  %s2 = inlined_call_operand.vmem [shape: f32[1,256], index: 2, kind: input, shape index: {}]
  %s3 = inlined_call_operand.vmem [shape: bf16[256,784], index: 3, kind: input, shape index: {}]
  %s4 = inlined_call_operand.vmem [shape: f32[1,784], index: 4, kind: input, shape index: {}]
  %s5 = inlined_call_operand.hbm [shape: bf16[8,784], index: 5, kind: output, shape index: {}]
  %s6 = sld [smem:[#allocation0]]
  $region30: #{tpu_custom_call.1} parent=0
    _
  %s8 = ssub.s32 1, %s6
  %s9 = scalar_select 0, %s8, %s6
  $region1: #{tpu_custom_call.1} parent=0
    #allocation2 [shape = 'u8[14336]{0}', space=vmem, size = 0x3800, scoped, tag = 'output window, operand 0, single buffered']
    #allocation3 [shape = 's32[1]{0}', space=sflag, size = 0x4, scoped, tag = 'scoped memory for tpu_custom_call.1']
    %10 = vsyncpa [#allocation3], 0
    // Predicated region
    $region2: #{tpu_custom_call.1} parent=1 // pred_check
      _
    $region3: #{tpu_custom_call.1} parent=1 // pred_check_branch
      %12 = sbr.rel (0) target = $region5
    $region4: #{tpu_custom_call.1} parent=1 // pred_region
      _
    $region5: #{tpu_custom_call.1} parent=1 // pred_fallthru
      _
    // Predicated region
    $region6: #{tpu_custom_call.1} parent=1 // pred_check
      _
    $region7: #{tpu_custom_call.1} parent=1 // pred_check_branch
      %14 = sbr.rel (0) target = $region9
    $region8: #{tpu_custom_call.1} parent=1 // pred_region
      _
    $region9: #{tpu_custom_call.1} parent=1 // pred_fallthru
      _
    // Predicated region
    $region10: #{tpu_custom_call.1} parent=1 // pred_check
      _
    $region11: #{tpu_custom_call.1} parent=1 // pred_check_branch
      %16 = sbr.rel (0) target = $region13
    $region12: #{tpu_custom_call.1} parent=1 // pred_region
      _
    $region13: #{tpu_custom_call.1} parent=1 // pred_fallthru
      _
    // Predicated region
    $region14: #{tpu_custom_call.1} parent=1 // pred_check
      _
    $region15: #{tpu_custom_call.1} parent=1 // pred_check_branch
      %18 = sbr.rel (0) target = $region17
    $region16: #{tpu_custom_call.1} parent=1 // pred_region
      _
    $region17: #{tpu_custom_call.1} parent=1 // pred_fallthru
      _
    // Predicated region
    $region18: #{tpu_custom_call.1} parent=1 // pred_check
      _
    $region19: #{tpu_custom_call.1} parent=1 // pred_check_branch
      %20 = sbr.rel (0) target = $region21
    $region20: #{tpu_custom_call.1} parent=1 // pred_region
      _
    $region21: #{tpu_custom_call.1} parent=1 // pred_fallthru
      _
    %v22 = vld [vmem:[%s0] sm:$0xff]
    %v23 = vpack.c.bf16 %v22, %v22
    %v24 = vld [vmem:[%s1] sm:$0xff]
    %v25 = vld [vmem:[%s1 + $0x8] sm:$0xff]
    %v26 = vld [vmem:[%s1 + $0x10] sm:$0xff]
    %v27 = vld [vmem:[%s1 + $0x18] sm:$0xff]
    %v28 = vld [vmem:[%s1 + $0x20] sm:$0xff]
    %v29 = vld [vmem:[%s1 + $0x28] sm:$0xff]
    %v30 = vld [vmem:[%s1 + $0x30] sm:$0xff]
    %v31 = vld [vmem:[%s1 + $0x38] sm:$0xff]
    %v32 = vld [vmem:[%s2] sm:$0x3]
    %v34 = vperm.slane %v32, 0
    %v35 = vperm.slane %v32, 1
    %v46 = vunpack.c.l.b16 %v24
    %v47 = vunpack.c.h.b16 %v24
    %v48 = vunpack.c.l.b16 %v25
    %v49 = vunpack.c.h.b16 %v25
    %v50 = vunpack.c.l.b16 %v26
    %v51 = vunpack.c.h.b16 %v26
    %v52 = vunpack.c.l.b16 %v27
    %v53 = vunpack.c.h.b16 %v27
    %v54 = vunpack.c.l.b16 %v28
    %v55 = vunpack.c.h.b16 %v28
    %v56 = vunpack.c.l.b16 %v29
    %v57 = vunpack.c.h.b16 %v29
    %v58 = vunpack.c.l.b16 %v30
    %v59 = vunpack.c.h.b16 %v30
    %v60 = vunpack.c.l.b16 %v31
    %v61 = vunpack.c.h.b16 %v31
    %v62 = vpack.c.b16 %v48, %v46
    %v63 = vpack.c.b16 %v49, %v47
    %v64 = vpack.c.b16 %v52, %v50
    %v65 = vpack.c.b16 %v53, %v51
    %v66 = vpack.c.b16 %v56, %v54
    %v67 = vpack.c.b16 %v57, %v55
    %v68 = vpack.c.b16 %v60, %v58
    %v69 = vpack.c.b16 %v61, %v59
    %vm78 = vcmask 523264
    %v80 = vsel %vm78, %v23, 0
    %82 = vmatpush.bf16.msra.mxu0 0
    %83 = vmatpush.bf16.msra.mxu0 0
    %84 = vmatpush.bf16.msra.mxu0 0
    %85 = vmatpush.bf16.msra.mxu0 0
    %86 = vmatpush.bf16.msra.mxu0 %v68
    %87 = vmatpush.bf16.msra.mxu0 %v66
    %88 = vmatpush.bf16.msra.mxu0 %v64
    %89 = vmatpush.bf16.msra.mxu0 %v62
    %90 = vmatmul.bf16.gmra.mxu0 %v80
    %v91 = vpop.f32.mrf.mxu0
    %v92 = vadd.f32 %v34, %v91
    %v93 = vpop.f32.mrf.mxu0
    %94 = vdwg.mxu0
    %95 = vmatpush.bf16.msra.mxu0 0
    %96 = vmatpush.bf16.msra.mxu0 0
    %97 = vmatpush.bf16.msra.mxu0 0
    %98 = vmatpush.bf16.msra.mxu0 0
    %99 = vmatpush.bf16.msra.mxu0 %v69
    %100 = vmatpush.bf16.msra.mxu0 %v67
    %101 = vmatpush.bf16.msra.mxu0 %v65
    %102 = vmatpush.bf16.msra.mxu0 %v63
    %103 = vmatmul.bf16.gmra.mxu0 %v80
    %v104 = vpop.f32.mrf.mxu0
    %v105 = vadd.f32 %v35, %v104
    %v106 = vpop.f32.mrf.mxu0
    %107 = vdwg.mxu0
    %v108 = vmul.f32 %v92, 0.1
    %v109 = vmul.f32 %v105, 0.1
    %v110 = vmax.f32 %v92, %v108
    %v111 = vmax.f32 %v105, %v109
    %v112 = vpack.c.bf16 %v110, %v110
    %v113 = vpack.c.bf16 %v111, %v111
    %v114 = vld [vmem:[%s3] sm:$0xff]
    %v115 = vld [vmem:[%s3 + $0x8] sm:$0xff]
    %v116 = vld [vmem:[%s3 + $0x10] sm:$0xff]
    %v117 = vld [vmem:[%s3 + $0x18] sm:$0xf]
    %v118 = vld [vmem:[%s3 + $0x1c] sm:$0xff]
    %v119 = vld [vmem:[%s3 + $0x24] sm:$0xff]
    %v120 = vld [vmem:[%s3 + $0x2c] sm:$0xff]
    %v121 = vld [vmem:[%s3 + $0x34] sm:$0xf]
    %v122 = vld [vmem:[%s3 + $0x38] sm:$0xff]
    %v123 = vld [vmem:[%s3 + $0x40] sm:$0xff]
    %v124 = vld [vmem:[%s3 + $0x48] sm:$0xff]
    %v125 = vld [vmem:[%s3 + $0x50] sm:$0xf]
    %v126 = vld [vmem:[%s3 + $0x54] sm:$0xff]
    %v127 = vld [vmem:[%s3 + $0x5c] sm:$0xff]
    %v128 = vld [vmem:[%s3 + $0x64] sm:$0xff]
    %v129 = vld [vmem:[%s3 + $0x6c] sm:$0xf]
    %v130 = vld [vmem:[%s3 + $0x70] sm:$0xff]
    %v131 = vld [vmem:[%s3 + $0x78] sm:$0xff]
    %v132 = vld [vmem:[%s3 + $0x80] sm:$0xff]
    %v133 = vld [vmem:[%s3 + $0x88] sm:$0xf]
    %v134 = vld [vmem:[%s3 + $0x8c] sm:$0xff]
    %v135 = vld [vmem:[%s3 + $0x94] sm:$0xff]
    %v136 = vld [vmem:[%s3 + $0x9c] sm:$0xff]
    %v137 = vld [vmem:[%s3 + $0xa4] sm:$0xf]
    %v138 = vld [vmem:[%s3 + $0xa8] sm:$0xff]
    %v139 = vld [vmem:[%s3 + $0xb0] sm:$0xff]
    %v140 = vld [vmem:[%s3 + $0xb8] sm:$0xff]
    %v141 = vld [vmem:[%s3 + $0xc0] sm:$0xf]
    %v142 = vld [vmem:[%s3 + $0xc4] sm:$0xff]
    %v143 = vld [vmem:[%s3 + $0xcc] sm:$0xff]
    %v144 = vld [vmem:[%s3 + $0xd4] sm:$0xff]
    %v145 = vld [vmem:[%s3 + $0xdc] sm:$0xf]
    %v146 = vld [vmem:[%s3 + $0xe0] sm:$0xff]
    %v147 = vld [vmem:[%s3 + $0xe8] sm:$0xff]
    %v148 = vld [vmem:[%s3 + $0xf0] sm:$0xff]
    %v149 = vld [vmem:[%s3 + $0xf8] sm:$0xf]
    %v150 = vld [vmem:[%s3 + $0xfc] sm:$0xff]
    %v151 = vld [vmem:[%s3 + $0x104] sm:$0xff]
    %v152 = vld [vmem:[%s3 + $0x10c] sm:$0xff]
    %v153 = vld [vmem:[%s3 + $0x114] sm:$0xf]
    %v154 = vld [vmem:[%s3 + $0x118] sm:$0xff]
    %v155 = vld [vmem:[%s3 + $0x120] sm:$0xff]
    %v156 = vld [vmem:[%s3 + $0x128] sm:$0xff]
    %v157 = vld [vmem:[%s3 + $0x130] sm:$0xf]
    %v158 = vld [vmem:[%s3 + $0x134] sm:$0xff]
    %v159 = vld [vmem:[%s3 + $0x13c] sm:$0xff]
    %v160 = vld [vmem:[%s3 + $0x144] sm:$0xff]
    %v161 = vld [vmem:[%s3 + $0x14c] sm:$0xf]
    %v162 = vld [vmem:[%s3 + $0x150] sm:$0xff]
    %v163 = vld [vmem:[%s3 + $0x158] sm:$0xff]
    %v164 = vld [vmem:[%s3 + $0x160] sm:$0xff]
    %v165 = vld [vmem:[%s3 + $0x168] sm:$0xf]
    %v166 = vld [vmem:[%s3 + $0x16c] sm:$0xff]
    %v167 = vld [vmem:[%s3 + $0x174] sm:$0xff]
    %v168 = vld [vmem:[%s3 + $0x17c] sm:$0xff]
    %v169 = vld [vmem:[%s3 + $0x184] sm:$0xf]
    %v170 = vld [vmem:[%s3 + $0x188] sm:$0xff]
    %v171 = vld [vmem:[%s3 + $0x190] sm:$0xff]
    %v172 = vld [vmem:[%s3 + $0x198] sm:$0xff]
    %v173 = vld [vmem:[%s3 + $0x1a0] sm:$0xf]
    %v174 = vld [vmem:[%s3 + $0x1a4] sm:$0xff]
    %v175 = vld [vmem:[%s3 + $0x1ac] sm:$0xff]
    %v176 = vld [vmem:[%s3 + $0x1b4] sm:$0xff]
    %v177 = vld [vmem:[%s3 + $0x1bc] sm:$0xf]
    %v178 = vld [vmem:[%s3 + $0x1c0] sm:$0xff]
    %v179 = vld [vmem:[%s3 + $0x1c8] sm:$0xff]
    %v180 = vld [vmem:[%s3 + $0x1d0] sm:$0xff]
    %v181 = vld [vmem:[%s3 + $0x1d8] sm:$0xf]
    %v182 = vld [vmem:[%s3 + $0x1dc] sm:$0xff]
    %v183 = vld [vmem:[%s3 + $0x1e4] sm:$0xff]
    %v184 = vld [vmem:[%s3 + $0x1ec] sm:$0xff]
    %v185 = vld [vmem:[%s3 + $0x1f4] sm:$0xf]
    %v186 = vld [vmem:[%s3 + $0x1f8] sm:$0xff]
    %v187 = vld [vmem:[%s3 + $0x200] sm:$0xff]
    %v188 = vld [vmem:[%s3 + $0x208] sm:$0xff]
    %v189 = vld [vmem:[%s3 + $0x210] sm:$0xf]
    %v190 = vld [vmem:[%s3 + $0x214] sm:$0xff]
    %v191 = vld [vmem:[%s3 + $0x21c] sm:$0xff]
    %v192 = vld [vmem:[%s3 + $0x224] sm:$0xff]
    %v193 = vld [vmem:[%s3 + $0x22c] sm:$0xf]
    %v194 = vld [vmem:[%s3 + $0x230] sm:$0xff]
    %v195 = vld [vmem:[%s3 + $0x238] sm:$0xff]
    %v196 = vld [vmem:[%s3 + $0x240] sm:$0xff]
    %v197 = vld [vmem:[%s3 + $0x248] sm:$0xf]
    %v198 = vld [vmem:[%s3 + $0x24c] sm:$0xff]
    %v199 = vld [vmem:[%s3 + $0x254] sm:$0xff]
    %v200 = vld [vmem:[%s3 + $0x25c] sm:$0xff]
    %v201 = vld [vmem:[%s3 + $0x264] sm:$0xf]
    %v202 = vld [vmem:[%s3 + $0x268] sm:$0xff]
    %v203 = vld [vmem:[%s3 + $0x270] sm:$0xff]
    %v204 = vld [vmem:[%s3 + $0x278] sm:$0xff]
    %v205 = vld [vmem:[%s3 + $0x280] sm:$0xf]
    %v206 = vld [vmem:[%s3 + $0x284] sm:$0xff]
    %v207 = vld [vmem:[%s3 + $0x28c] sm:$0xff]
    %v208 = vld [vmem:[%s3 + $0x294] sm:$0xff]
    %v209 = vld [vmem:[%s3 + $0x29c] sm:$0xf]
    %v210 = vld [vmem:[%s3 + $0x2a0] sm:$0xff]
    %v211 = vld [vmem:[%s3 + $0x2a8] sm:$0xff]
    %v212 = vld [vmem:[%s3 + $0x2b0] sm:$0xff]
    %v213 = vld [vmem:[%s3 + $0x2b8] sm:$0xf]
    %v214 = vld [vmem:[%s3 + $0x2bc] sm:$0xff]
    %v215 = vld [vmem:[%s3 + $0x2c4] sm:$0xff]
    %v216 = vld [vmem:[%s3 + $0x2cc] sm:$0xff]
    %v217 = vld [vmem:[%s3 + $0x2d4] sm:$0xf]
    %v218 = vld [vmem:[%s3 + $0x2d8] sm:$0xff]
    %v219 = vld [vmem:[%s3 + $0x2e0] sm:$0xff]
    %v220 = vld [vmem:[%s3 + $0x2e8] sm:$0xff]
    %v221 = vld [vmem:[%s3 + $0x2f0] sm:$0xf]
    %v222 = vld [vmem:[%s3 + $0x2f4] sm:$0xff]
    %v223 = vld [vmem:[%s3 + $0x2fc] sm:$0xff]
    %v224 = vld [vmem:[%s3 + $0x304] sm:$0xff]
    %v225 = vld [vmem:[%s3 + $0x30c] sm:$0xf]
    %v226 = vld [vmem:[%s3 + $0x310] sm:$0xff]
    %v227 = vld [vmem:[%s3 + $0x318] sm:$0xff]
    %v228 = vld [vmem:[%s3 + $0x320] sm:$0xff]
    %v229 = vld [vmem:[%s3 + $0x328] sm:$0xf]
    %v230 = vld [vmem:[%s3 + $0x32c] sm:$0xff]
    %v231 = vld [vmem:[%s3 + $0x334] sm:$0xff]
    %v232 = vld [vmem:[%s3 + $0x33c] sm:$0xff]
    %v233 = vld [vmem:[%s3 + $0x344] sm:$0xf]
    %v234 = vld [vmem:[%s3 + $0x348] sm:$0xff]
    %v235 = vld [vmem:[%s3 + $0x350] sm:$0xff]
    %v236 = vld [vmem:[%s3 + $0x358] sm:$0xff]
    %v237 = vld [vmem:[%s3 + $0x360] sm:$0xf]
    %v238 = vld [vmem:[%s3 + $0x364] sm:$0xff]
    %v239 = vld [vmem:[%s3 + $0x36c] sm:$0xff]
    %v240 = vld [vmem:[%s3 + $0x374] sm:$0xff]
    %v241 = vld [vmem:[%s3 + $0x37c] sm:$0xf]
    %v242 = vld [vmem:[%s4] sm:$0x7f]
    %v244 = vperm.slane %v242, 0
    %v245 = vperm.slane %v242, 1
    %v246 = vperm.slane %v242, 2
    %v247 = vperm.slane %v242, 3
    %v248 = vperm.slane %v242, 4
    %v249 = vperm.slane %v242, 5
    %v250 = vperm.slane %v242, 6
    %v386 = vunpack.c.l.b16 %v114
    %v387 = vunpack.c.h.b16 %v114
    %v388 = vunpack.c.l.b16 %v115
    %v389 = vunpack.c.h.b16 %v115
    %v390 = vunpack.c.l.b16 %v116
    %v391 = vunpack.c.h.b16 %v116
    %v392 = vunpack.c.l.b16 %v117
    %v393 = vunpack.c.l.b16 %v118
    %v394 = vunpack.c.h.b16 %v118
    %v395 = vunpack.c.l.b16 %v119
    %v396 = vunpack.c.h.b16 %v119
    %v397 = vunpack.c.l.b16 %v120
    %v398 = vunpack.c.h.b16 %v120
    %v399 = vunpack.c.l.b16 %v121
    %v400 = vunpack.c.l.b16 %v122
    %v401 = vunpack.c.h.b16 %v122
    %v402 = vunpack.c.l.b16 %v123
    %v403 = vunpack.c.h.b16 %v123
    %v404 = vunpack.c.l.b16 %v124
    %v405 = vunpack.c.h.b16 %v124
    %v406 = vunpack.c.l.b16 %v125
    %v407 = vunpack.c.l.b16 %v126
    %v408 = vunpack.c.h.b16 %v126
    %v409 = vunpack.c.l.b16 %v127
    %v410 = vunpack.c.h.b16 %v127
    %v411 = vunpack.c.l.b16 %v128
    %v412 = vunpack.c.h.b16 %v128
    %v413 = vunpack.c.l.b16 %v129
    %v414 = vunpack.c.l.b16 %v130
    %v415 = vunpack.c.h.b16 %v130
    %v416 = vunpack.c.l.b16 %v131
    %v417 = vunpack.c.h.b16 %v131
    %v418 = vunpack.c.l.b16 %v132
    %v419 = vunpack.c.h.b16 %v132
    %v420 = vunpack.c.l.b16 %v133
    %v421 = vunpack.c.l.b16 %v134
    %v422 = vunpack.c.h.b16 %v134
    %v423 = vunpack.c.l.b16 %v135
    %v424 = vunpack.c.h.b16 %v135
    %v425 = vunpack.c.l.b16 %v136
    %v426 = vunpack.c.h.b16 %v136
    %v427 = vunpack.c.l.b16 %v137
    %v428 = vunpack.c.l.b16 %v138
    %v429 = vunpack.c.h.b16 %v138
    %v430 = vunpack.c.l.b16 %v139
    %v431 = vunpack.c.h.b16 %v139
    %v432 = vunpack.c.l.b16 %v140
    %v433 = vunpack.c.h.b16 %v140
    %v434 = vunpack.c.l.b16 %v141
    %v435 = vunpack.c.l.b16 %v142
    %v436 = vunpack.c.h.b16 %v142
    %v437 = vunpack.c.l.b16 %v143
    %v438 = vunpack.c.h.b16 %v143
    %v439 = vunpack.c.l.b16 %v144
    %v440 = vunpack.c.h.b16 %v144
    %v441 = vunpack.c.l.b16 %v145
    %v442 = vunpack.c.l.b16 %v146
    %v443 = vunpack.c.h.b16 %v146
    %v444 = vunpack.c.l.b16 %v147
    %v445 = vunpack.c.h.b16 %v147
    %v446 = vunpack.c.l.b16 %v148
    %v447 = vunpack.c.h.b16 %v148
    %v448 = vunpack.c.l.b16 %v149
    %v449 = vunpack.c.l.b16 %v150
    %v450 = vunpack.c.h.b16 %v150
    %v451 = vunpack.c.l.b16 %v151
    %v452 = vunpack.c.h.b16 %v151
    %v453 = vunpack.c.l.b16 %v152
    %v454 = vunpack.c.h.b16 %v152
    %v455 = vunpack.c.l.b16 %v153
    %v456 = vunpack.c.l.b16 %v154
    %v457 = vunpack.c.h.b16 %v154
    %v458 = vunpack.c.l.b16 %v155
    %v459 = vunpack.c.h.b16 %v155
    %v460 = vunpack.c.l.b16 %v156
    %v461 = vunpack.c.h.b16 %v156
    %v462 = vunpack.c.l.b16 %v157
    %v463 = vunpack.c.l.b16 %v158
    %v464 = vunpack.c.h.b16 %v158
    %v465 = vunpack.c.l.b16 %v159
    %v466 = vunpack.c.h.b16 %v159
    %v467 = vunpack.c.l.b16 %v160
    %v468 = vunpack.c.h.b16 %v160
    %v469 = vunpack.c.l.b16 %v161
    %v470 = vunpack.c.l.b16 %v162
    %v471 = vunpack.c.h.b16 %v162
    %v472 = vunpack.c.l.b16 %v163
    %v473 = vunpack.c.h.b16 %v163
    %v474 = vunpack.c.l.b16 %v164
    %v475 = vunpack.c.h.b16 %v164
    %v476 = vunpack.c.l.b16 %v165
    %v477 = vunpack.c.l.b16 %v166
    %v478 = vunpack.c.h.b16 %v166
    %v479 = vunpack.c.l.b16 %v167
    %v480 = vunpack.c.h.b16 %v167
    %v481 = vunpack.c.l.b16 %v168
    %v482 = vunpack.c.h.b16 %v168
    %v483 = vunpack.c.l.b16 %v169
    %v484 = vunpack.c.l.b16 %v170
    %v485 = vunpack.c.h.b16 %v170
    %v486 = vunpack.c.l.b16 %v171
    %v487 = vunpack.c.h.b16 %v171
    %v488 = vunpack.c.l.b16 %v172
    %v489 = vunpack.c.h.b16 %v172
    %v490 = vunpack.c.l.b16 %v173
    %v491 = vunpack.c.l.b16 %v174
    %v492 = vunpack.c.h.b16 %v174
    %v493 = vunpack.c.l.b16 %v175
    %v494 = vunpack.c.h.b16 %v175
    %v495 = vunpack.c.l.b16 %v176
    %v496 = vunpack.c.h.b16 %v176
    %v497 = vunpack.c.l.b16 %v177
    %v498 = vunpack.c.l.b16 %v178
    %v499 = vunpack.c.h.b16 %v178
    %v500 = vunpack.c.l.b16 %v179
    %v501 = vunpack.c.h.b16 %v179
    %v502 = vunpack.c.l.b16 %v180
    %v503 = vunpack.c.h.b16 %v180
    %v504 = vunpack.c.l.b16 %v181
    %v505 = vunpack.c.l.b16 %v182
    %v506 = vunpack.c.h.b16 %v182
    %v507 = vunpack.c.l.b16 %v183
    %v508 = vunpack.c.h.b16 %v183
    %v509 = vunpack.c.l.b16 %v184
    %v510 = vunpack.c.h.b16 %v184
    %v511 = vunpack.c.l.b16 %v185
    %v512 = vunpack.c.l.b16 %v186
    %v513 = vunpack.c.h.b16 %v186
    %v514 = vunpack.c.l.b16 %v187
    %v515 = vunpack.c.h.b16 %v187
    %v516 = vunpack.c.l.b16 %v188
    %v517 = vunpack.c.h.b16 %v188
    %v518 = vunpack.c.l.b16 %v189
    %v519 = vunpack.c.l.b16 %v190
    %v520 = vunpack.c.h.b16 %v190
    %v521 = vunpack.c.l.b16 %v191
    %v522 = vunpack.c.h.b16 %v191
    %v523 = vunpack.c.l.b16 %v192
    %v524 = vunpack.c.h.b16 %v192
    %v525 = vunpack.c.l.b16 %v193
    %v526 = vunpack.c.l.b16 %v194
    %v527 = vunpack.c.h.b16 %v194
    %v528 = vunpack.c.l.b16 %v195
    %v529 = vunpack.c.h.b16 %v195
    %v530 = vunpack.c.l.b16 %v196
    %v531 = vunpack.c.h.b16 %v196
    %v532 = vunpack.c.l.b16 %v197
    %v533 = vunpack.c.l.b16 %v198
    %v534 = vunpack.c.h.b16 %v198
    %v535 = vunpack.c.l.b16 %v199
    %v536 = vunpack.c.h.b16 %v199
    %v537 = vunpack.c.l.b16 %v200
    %v538 = vunpack.c.h.b16 %v200
    %v539 = vunpack.c.l.b16 %v201
    %v540 = vunpack.c.l.b16 %v202
    %v541 = vunpack.c.h.b16 %v202
    %v542 = vunpack.c.l.b16 %v203
    %v543 = vunpack.c.h.b16 %v203
    %v544 = vunpack.c.l.b16 %v204
    %v545 = vunpack.c.h.b16 %v204
    %v546 = vunpack.c.l.b16 %v205
    %v547 = vunpack.c.l.b16 %v206
    %v548 = vunpack.c.h.b16 %v206
    %v549 = vunpack.c.l.b16 %v207
    %v550 = vunpack.c.h.b16 %v207
    %v551 = vunpack.c.l.b16 %v208
    %v552 = vunpack.c.h.b16 %v208
    %v553 = vunpack.c.l.b16 %v209
    %v554 = vunpack.c.l.b16 %v210
    %v555 = vunpack.c.h.b16 %v210
    %v556 = vunpack.c.l.b16 %v211
    %v557 = vunpack.c.h.b16 %v211
    %v558 = vunpack.c.l.b16 %v212
    %v559 = vunpack.c.h.b16 %v212
    %v560 = vunpack.c.l.b16 %v213
    %v561 = vunpack.c.l.b16 %v214
    %v562 = vunpack.c.h.b16 %v214
    %v563 = vunpack.c.l.b16 %v215
    %v564 = vunpack.c.h.b16 %v215
    %v565 = vunpack.c.l.b16 %v216
    %v566 = vunpack.c.h.b16 %v216
    %v567 = vunpack.c.l.b16 %v217
    %v568 = vunpack.c.l.b16 %v218
    %v569 = vunpack.c.h.b16 %v218
    %v570 = vunpack.c.l.b16 %v219
    %v571 = vunpack.c.h.b16 %v219
    %v572 = vunpack.c.l.b16 %v220
    %v573 = vunpack.c.h.b16 %v220
    %v574 = vunpack.c.l.b16 %v221
    %v575 = vunpack.c.l.b16 %v222
    %v576 = vunpack.c.h.b16 %v222
    %v577 = vunpack.c.l.b16 %v223
    %v578 = vunpack.c.h.b16 %v223
    %v579 = vunpack.c.l.b16 %v224
    %v580 = vunpack.c.h.b16 %v224
    %v581 = vunpack.c.l.b16 %v225
    %v582 = vunpack.c.l.b16 %v226
    %v583 = vunpack.c.h.b16 %v226
    %v584 = vunpack.c.l.b16 %v227
    %v585 = vunpack.c.h.b16 %v227
    %v586 = vunpack.c.l.b16 %v228
    %v587 = vunpack.c.h.b16 %v228
    %v588 = vunpack.c.l.b16 %v229
    %v589 = vunpack.c.l.b16 %v230
    %v590 = vunpack.c.h.b16 %v230
    %v591 = vunpack.c.l.b16 %v231
    %v592 = vunpack.c.h.b16 %v231
    %v593 = vunpack.c.l.b16 %v232
    %v594 = vunpack.c.h.b16 %v232
    %v595 = vunpack.c.l.b16 %v233
    %v596 = vunpack.c.l.b16 %v234
    %v597 = vunpack.c.h.b16 %v234
    %v598 = vunpack.c.l.b16 %v235
    %v599 = vunpack.c.h.b16 %v235
    %v600 = vunpack.c.l.b16 %v236
    %v601 = vunpack.c.h.b16 %v236
    %v602 = vunpack.c.l.b16 %v237
    %v603 = vunpack.c.l.b16 %v238
    %v604 = vunpack.c.h.b16 %v238
    %v605 = vunpack.c.l.b16 %v239
    %v606 = vunpack.c.h.b16 %v239
    %v607 = vunpack.c.l.b16 %v240
    %v608 = vunpack.c.h.b16 %v240
    %v609 = vunpack.c.l.b16 %v241
    %v610 = vpack.c.b16 %v393, %v386
    %v611 = vpack.c.b16 %v394, %v387
    %v612 = vpack.c.b16 %v395, %v388
    %v613 = vpack.c.b16 %v396, %v389
    %v614 = vpack.c.b16 %v397, %v390
    %v615 = vpack.c.b16 %v398, %v391
    %v616 = vpack.c.b16 %v399, %v392
    %v617 = vpack.c.b16 %v407, %v400
    %v618 = vpack.c.b16 %v408, %v401
    %v619 = vpack.c.b16 %v409, %v402
    %v620 = vpack.c.b16 %v410, %v403
    %v621 = vpack.c.b16 %v411, %v404
    %v622 = vpack.c.b16 %v412, %v405
    %v623 = vpack.c.b16 %v413, %v406
    %v624 = vpack.c.b16 %v421, %v414
    %v625 = vpack.c.b16 %v422, %v415
    %v626 = vpack.c.b16 %v423, %v416
    %v627 = vpack.c.b16 %v424, %v417
    %v628 = vpack.c.b16 %v425, %v418
    %v629 = vpack.c.b16 %v426, %v419
    %v630 = vpack.c.b16 %v427, %v420
    %v631 = vpack.c.b16 %v435, %v428
    %v632 = vpack.c.b16 %v436, %v429
    %v633 = vpack.c.b16 %v437, %v430
    %v634 = vpack.c.b16 %v438, %v431
    %v635 = vpack.c.b16 %v439, %v432
    %v636 = vpack.c.b16 %v440, %v433
    %v637 = vpack.c.b16 %v441, %v434
    %v638 = vpack.c.b16 %v449, %v442
    %v639 = vpack.c.b16 %v450, %v443
    %v640 = vpack.c.b16 %v451, %v444
    %v641 = vpack.c.b16 %v452, %v445
    %v642 = vpack.c.b16 %v453, %v446
    %v643 = vpack.c.b16 %v454, %v447
    %v644 = vpack.c.b16 %v455, %v448
    %v645 = vpack.c.b16 %v463, %v456
    %v646 = vpack.c.b16 %v464, %v457
    %v647 = vpack.c.b16 %v465, %v458
    %v648 = vpack.c.b16 %v466, %v459
    %v649 = vpack.c.b16 %v467, %v460
    %v650 = vpack.c.b16 %v468, %v461
    %v651 = vpack.c.b16 %v469, %v462
    %v652 = vpack.c.b16 %v477, %v470
    %v653 = vpack.c.b16 %v478, %v471
    %v654 = vpack.c.b16 %v479, %v472
    %v655 = vpack.c.b16 %v480, %v473
    %v656 = vpack.c.b16 %v481, %v474
    %v657 = vpack.c.b16 %v482, %v475
    %v658 = vpack.c.b16 %v483, %v476
    %v659 = vpack.c.b16 %v491, %v484
    %v660 = vpack.c.b16 %v492, %v485
    %v661 = vpack.c.b16 %v493, %v486
    %v662 = vpack.c.b16 %v494, %v487
    %v663 = vpack.c.b16 %v495, %v488
    %v664 = vpack.c.b16 %v496, %v489
    %v665 = vpack.c.b16 %v497, %v490
    %v666 = vpack.c.b16 %v505, %v498
    %v667 = vpack.c.b16 %v506, %v499
    %v668 = vpack.c.b16 %v507, %v500
    %v669 = vpack.c.b16 %v508, %v501
    %v670 = vpack.c.b16 %v509, %v502
    %v671 = vpack.c.b16 %v510, %v503
    %v672 = vpack.c.b16 %v511, %v504
    %v673 = vpack.c.b16 %v519, %v512
    %v674 = vpack.c.b16 %v520, %v513
    %v675 = vpack.c.b16 %v521, %v514
    %v676 = vpack.c.b16 %v522, %v515
    %v677 = vpack.c.b16 %v523, %v516
    %v678 = vpack.c.b16 %v524, %v517
    %v679 = vpack.c.b16 %v525, %v518
    %v680 = vpack.c.b16 %v533, %v526
    %v681 = vpack.c.b16 %v534, %v527
    %v682 = vpack.c.b16 %v535, %v528
    %v683 = vpack.c.b16 %v536, %v529
    %v684 = vpack.c.b16 %v537, %v530
    %v685 = vpack.c.b16 %v538, %v531
    %v686 = vpack.c.b16 %v539, %v532
    %v687 = vpack.c.b16 %v547, %v540
    %v688 = vpack.c.b16 %v548, %v541
    %v689 = vpack.c.b16 %v549, %v542
    %v690 = vpack.c.b16 %v550, %v543
    %v691 = vpack.c.b16 %v551, %v544
    %v692 = vpack.c.b16 %v552, %v545
    %v693 = vpack.c.b16 %v553, %v546
    %v694 = vpack.c.b16 %v561, %v554
    %v695 = vpack.c.b16 %v562, %v555
    %v696 = vpack.c.b16 %v563, %v556
    %v697 = vpack.c.b16 %v564, %v557
    %v698 = vpack.c.b16 %v565, %v558
    %v699 = vpack.c.b16 %v566, %v559
    %v700 = vpack.c.b16 %v567, %v560
    %v701 = vpack.c.b16 %v575, %v568
    %v702 = vpack.c.b16 %v576, %v569
    %v703 = vpack.c.b16 %v577, %v570
    %v704 = vpack.c.b16 %v578, %v571
    %v705 = vpack.c.b16 %v579, %v572
    %v706 = vpack.c.b16 %v580, %v573
    %v707 = vpack.c.b16 %v581, %v574
    %v708 = vpack.c.b16 %v589, %v582
    %v709 = vpack.c.b16 %v590, %v583
    %v710 = vpack.c.b16 %v591, %v584
    %v711 = vpack.c.b16 %v592, %v585
    %v712 = vpack.c.b16 %v593, %v586
    %v713 = vpack.c.b16 %v594, %v587
    %v714 = vpack.c.b16 %v595, %v588
    %v715 = vpack.c.b16 %v603, %v596
    %v716 = vpack.c.b16 %v604, %v597
    %v717 = vpack.c.b16 %v605, %v598
    %v718 = vpack.c.b16 %v606, %v599
    %v719 = vpack.c.b16 %v607, %v600
    %v720 = vpack.c.b16 %v608, %v601
    %v721 = vpack.c.b16 %v609, %v602
    %834 = vmatpush.bf16.msra.mxu0 %v659
    %835 = vmatpush.bf16.msra.mxu0 %v652
    %836 = vmatpush.bf16.msra.mxu0 %v645
    %837 = vmatpush.bf16.msra.mxu0 %v638
    %838 = vmatpush.bf16.msra.mxu0 %v631
    %839 = vmatpush.bf16.msra.mxu0 %v624
    %840 = vmatpush.bf16.msra.mxu0 %v617
    %841 = vmatpush.bf16.msra.mxu0 %v610
    %842 = vmatmul.bf16.gmra.mxu0 %v112
    %v843 = vpop.f32.mrf.mxu0
    %v844 = vadd.f32 %v244, %v843
    %v845 = vpop.f32.mrf.mxu0
    %846 = vdwg.mxu0
    %847 = vmatpush.bf16.msra.mxu0 %v715
    %848 = vmatpush.bf16.msra.mxu0 %v708
    %849 = vmatpush.bf16.msra.mxu0 %v701
    %850 = vmatpush.bf16.msra.mxu0 %v694
    %851 = vmatpush.bf16.msra.mxu0 %v687
    %852 = vmatpush.bf16.msra.mxu0 %v680
    %853 = vmatpush.bf16.msra.mxu0 %v673
    %854 = vmatpush.bf16.msra.mxu0 %v666
    %855 = vmatmul.bf16.gmra.mxu0 %v113
    %v856 = vpop.f32.mrf.mxu0
    %v857 = vadd.f32 %v844, %v856
    %v858 = vpop.f32.mrf.mxu0
    %859 = vdwg.mxu0
    %860 = vmatpush.bf16.msra.mxu0 %v660
    %861 = vmatpush.bf16.msra.mxu0 %v653
    %862 = vmatpush.bf16.msra.mxu0 %v646
    %863 = vmatpush.bf16.msra.mxu0 %v639
    %864 = vmatpush.bf16.msra.mxu0 %v632
    %865 = vmatpush.bf16.msra.mxu0 %v625
    %866 = vmatpush.bf16.msra.mxu0 %v618
    %867 = vmatpush.bf16.msra.mxu0 %v611
    %868 = vmatmul.bf16.gmra.mxu0 %v112
    %v869 = vpop.f32.mrf.mxu0
    %v870 = vadd.f32 %v245, %v869
    %v871 = vpop.f32.mrf.mxu0
    %872 = vdwg.mxu0
    %873 = vmatpush.bf16.msra.mxu0 %v716
    %874 = vmatpush.bf16.msra.mxu0 %v709
    %875 = vmatpush.bf16.msra.mxu0 %v702
    %876 = vmatpush.bf16.msra.mxu0 %v695
    %877 = vmatpush.bf16.msra.mxu0 %v688
    %878 = vmatpush.bf16.msra.mxu0 %v681
    %879 = vmatpush.bf16.msra.mxu0 %v674
    %880 = vmatpush.bf16.msra.mxu0 %v667
    %881 = vmatmul.bf16.gmra.mxu0 %v113
    %v882 = vpop.f32.mrf.mxu0
    %v883 = vadd.f32 %v870, %v882
    %v884 = vpop.f32.mrf.mxu0
    %885 = vdwg.mxu0
    %886 = vmatpush.bf16.msra.mxu0 %v661
    %887 = vmatpush.bf16.msra.mxu0 %v654
    %888 = vmatpush.bf16.msra.mxu0 %v647
    %889 = vmatpush.bf16.msra.mxu0 %v640
    %890 = vmatpush.bf16.msra.mxu0 %v633
    %891 = vmatpush.bf16.msra.mxu0 %v626
    %892 = vmatpush.bf16.msra.mxu0 %v619
    %893 = vmatpush.bf16.msra.mxu0 %v612
    %894 = vmatmul.bf16.gmra.mxu0 %v112
    %v895 = vpop.f32.mrf.mxu0
    %v896 = vadd.f32 %v246, %v895
    %v897 = vpop.f32.mrf.mxu0
    %898 = vdwg.mxu0
    %899 = vmatpush.bf16.msra.mxu0 %v717
    %900 = vmatpush.bf16.msra.mxu0 %v710
    %901 = vmatpush.bf16.msra.mxu0 %v703
    %902 = vmatpush.bf16.msra.mxu0 %v696
    %903 = vmatpush.bf16.msra.mxu0 %v689
    %904 = vmatpush.bf16.msra.mxu0 %v682
    %905 = vmatpush.bf16.msra.mxu0 %v675
    %906 = vmatpush.bf16.msra.mxu0 %v668
    %907 = vmatmul.bf16.gmra.mxu0 %v113
    %v908 = vpop.f32.mrf.mxu0
    %v909 = vadd.f32 %v896, %v908
    %v910 = vpop.f32.mrf.mxu0
    %911 = vdwg.mxu0
    %912 = vmatpush.bf16.msra.mxu0 %v662
    %913 = vmatpush.bf16.msra.mxu0 %v655
    %914 = vmatpush.bf16.msra.mxu0 %v648
    %915 = vmatpush.bf16.msra.mxu0 %v641
    %916 = vmatpush.bf16.msra.mxu0 %v634
    %917 = vmatpush.bf16.msra.mxu0 %v627
    %918 = vmatpush.bf16.msra.mxu0 %v620
    %919 = vmatpush.bf16.msra.mxu0 %v613
    %920 = vmatmul.bf16.gmra.mxu0 %v112
    %v921 = vpop.f32.mrf.mxu0
    %v922 = vadd.f32 %v247, %v921
    %v923 = vpop.f32.mrf.mxu0
    %924 = vdwg.mxu0
    %925 = vmatpush.bf16.msra.mxu0 %v718
    %926 = vmatpush.bf16.msra.mxu0 %v711
    %927 = vmatpush.bf16.msra.mxu0 %v704
    %928 = vmatpush.bf16.msra.mxu0 %v697
    %929 = vmatpush.bf16.msra.mxu0 %v690
    %930 = vmatpush.bf16.msra.mxu0 %v683
    %931 = vmatpush.bf16.msra.mxu0 %v676
    %932 = vmatpush.bf16.msra.mxu0 %v669
    %933 = vmatmul.bf16.gmra.mxu0 %v113
    %v934 = vpop.f32.mrf.mxu0
    %v935 = vadd.f32 %v922, %v934
    %v936 = vpop.f32.mrf.mxu0
    %937 = vdwg.mxu0
    %938 = vmatpush.bf16.msra.mxu0 %v663
    %939 = vmatpush.bf16.msra.mxu0 %v656
    %940 = vmatpush.bf16.msra.mxu0 %v649
    %941 = vmatpush.bf16.msra.mxu0 %v642
    %942 = vmatpush.bf16.msra.mxu0 %v635
    %943 = vmatpush.bf16.msra.mxu0 %v628
    %944 = vmatpush.bf16.msra.mxu0 %v621
    %945 = vmatpush.bf16.msra.mxu0 %v614
    %946 = vmatmul.bf16.gmra.mxu0 %v112
    %v947 = vpop.f32.mrf.mxu0
    %v948 = vadd.f32 %v248, %v947
    %v949 = vpop.f32.mrf.mxu0
    %950 = vdwg.mxu0
    %951 = vmatpush.bf16.msra.mxu0 %v719
    %952 = vmatpush.bf16.msra.mxu0 %v712
    %953 = vmatpush.bf16.msra.mxu0 %v705
    %954 = vmatpush.bf16.msra.mxu0 %v698
    %955 = vmatpush.bf16.msra.mxu0 %v691
    %956 = vmatpush.bf16.msra.mxu0 %v684
    %957 = vmatpush.bf16.msra.mxu0 %v677
    %958 = vmatpush.bf16.msra.mxu0 %v670
    %959 = vmatmul.bf16.gmra.mxu0 %v113
    %v960 = vpop.f32.mrf.mxu0
    %v961 = vadd.f32 %v948, %v960
    %v962 = vpop.f32.mrf.mxu0
    %963 = vdwg.mxu0
    %964 = vmatpush.bf16.msra.mxu0 %v664
    %965 = vmatpush.bf16.msra.mxu0 %v657
    %966 = vmatpush.bf16.msra.mxu0 %v650
    %967 = vmatpush.bf16.msra.mxu0 %v643
    %968 = vmatpush.bf16.msra.mxu0 %v636
    %969 = vmatpush.bf16.msra.mxu0 %v629
    %970 = vmatpush.bf16.msra.mxu0 %v622
    %971 = vmatpush.bf16.msra.mxu0 %v615
    %972 = vmatmul.bf16.gmra.mxu0 %v112
    %v973 = vpop.f32.mrf.mxu0
    %v974 = vadd.f32 %v249, %v973
    %v975 = vpop.f32.mrf.mxu0
    %976 = vdwg.mxu0
    %977 = vmatpush.bf16.msra.mxu0 %v720
    %978 = vmatpush.bf16.msra.mxu0 %v713
    %979 = vmatpush.bf16.msra.mxu0 %v706
    %980 = vmatpush.bf16.msra.mxu0 %v699
    %981 = vmatpush.bf16.msra.mxu0 %v692
    %982 = vmatpush.bf16.msra.mxu0 %v685
    %983 = vmatpush.bf16.msra.mxu0 %v678
    %984 = vmatpush.bf16.msra.mxu0 %v671
    %985 = vmatmul.bf16.gmra.mxu0 %v113
    %v986 = vpop.f32.mrf.mxu0
    %v987 = vadd.f32 %v974, %v986
    %v988 = vpop.f32.mrf.mxu0
    %989 = vdwg.mxu0
    %990 = vmatpush.bf16.msra.mxu0 %v665
    %991 = vmatpush.bf16.msra.mxu0 %v658
    %992 = vmatpush.bf16.msra.mxu0 %v651
    %993 = vmatpush.bf16.msra.mxu0 %v644
    %994 = vmatpush.bf16.msra.mxu0 %v637
    %995 = vmatpush.bf16.msra.mxu0 %v630
    %996 = vmatpush.bf16.msra.mxu0 %v623
    %997 = vmatpush.bf16.msra.mxu0 %v616
    %998 = vmatmul.bf16.gmra.mxu0 %v112
    %v999 = vpop.f32.mrf.mxu0
    %v1000 = vadd.f32 %v250, %v999
    %v1001 = vpop.f32.mrf.mxu0
    %1002 = vdwg.mxu0
    %1003 = vmatpush.bf16.msra.mxu0 %v721
    %1004 = vmatpush.bf16.msra.mxu0 %v714
    %1005 = vmatpush.bf16.msra.mxu0 %v707
    %1006 = vmatpush.bf16.msra.mxu0 %v700
    %1007 = vmatpush.bf16.msra.mxu0 %v693
    %1008 = vmatpush.bf16.msra.mxu0 %v686
    %1009 = vmatpush.bf16.msra.mxu0 %v679
    %1010 = vmatpush.bf16.msra.mxu0 %v672
    %1011 = vmatmul.bf16.gmra.mxu0 %v113
    %v1012 = vpop.f32.mrf.mxu0
    %v1013 = vadd.f32 %v1000, %v1012
    %v1014 = vpop.f32.mrf.mxu0
    %1015 = vdwg.mxu0
    %v1016 = vtanh.pop %v857
    %v1017 = vtanh.pop %v883
    %v1018 = vtanh.pop %v909
    %v1019 = vtanh.pop %v935
    %v1020 = vtanh.pop %v961
    %v1021 = vtanh.pop %v987
    %v1022 = vtanh.pop %v1013
    %v1023 = vpack.c.bf16 %v1017, %v1016
    %v1024 = vpack.c.bf16 %v1019, %v1018
    %v1025 = vpack.c.bf16 %v1021, %v1020
    %v1026 = vpack.c.bf16 %v1022, %v1022
    %1027 = vst [vmem:[#allocation2] sm:$0xff] %v1023
    %1028 = vst [vmem:[#allocation2 + $0x8] sm:$0xff] %v1024
    %1029 = vst [vmem:[#allocation2 + $0x10] sm:$0xff] %v1025
    %vm1030 = vcmask 125952
    %1031 = vst.msk [vmem:[#allocation2 + $0x18] sm:$0xf] %vm1030, %v1026
    // Predicated region
    $region22: #{tpu_custom_call.1} parent=1 // pred_check
      _
    $region23: #{tpu_custom_call.1} parent=1 // pred_check_branch
      %1033 = sbr.rel (0) target = $region25
    $region24: #{tpu_custom_call.1} parent=1 // pred_region
      %1035 = vsyncadd [#allocation3], 0
      %s1037 = sshll.u32 [#allocation2], 4
      %s1038 = int_to_ptr.vmem [resolvable:$true] %s1037
      %s1039 = sshll.u32 %s5, 4
      %s1040 = int_to_ptr.hbm [resolvable:$true] %s1039
      %1042 = dma.vmem_to_hbm [thread:$0]  %s1038, 448, %s1040, [#allocation3]
    $region25: #{tpu_custom_call.1} parent=1 // pred_fallthru
      _
    // Predicated region
    $region26: #{tpu_custom_call.1} parent=1 // pred_check
      _
    $region27: #{tpu_custom_call.1} parent=1 // pred_check_branch
      %1044 = sbr.rel (0) target = $region29
    $region28: #{tpu_custom_call.1} parent=1 // pred_region
      %1046 = dma.done [#allocation3], 448
    $region29: #{tpu_custom_call.1} parent=1 // pred_fallthru
      _
    %1047 = vsyncpa [#allocation3], 1

</llo_original>
